<compile_context>
chip_gen: v5e
topology: v5e:2x2
jax: 0.10.0
libtpu: 0.0.40
codegen_flags: <defaults>
</compile_context>

<pallas_src>
import jax
import jax.numpy as jnp
from jax.experimental import pallas as pl
from jax.experimental.pallas import tpu as pltpu


def _make_agg_kernel(agg_type: str):
    """Kernel reducing a [bt, S, HD] tile over axis 1 (the num_sample dim)."""

    def kernel(x_ref, o_ref):
        x = x_ref[...]  # (bt, S, HD)
        if agg_type in ("add", "sum"):
            o_ref[...] = jnp.sum(x, axis=1)
        elif agg_type == "mean":
            o_ref[...] = jnp.mean(x, axis=1)
        else:  # "max"
            o_ref[...] = jnp.max(x, axis=1)

    return kernel


def batch_pooling_aggregator(
    neighbor_vecs: jax.Array,
    alpha=None,            # accepted for API parity; unused (dead code in PyTorch forward)
    num_sample: int | None = None,
    need_softmax: bool = False,
    *,
    agg_type: str = "add",
) -> jax.Array:
    """Pallas implementation of BatchPoolingAggregator.forward.

    Output == reduce(neighbor_vecs, dim=-3) with the configured agg_type,
    because the PyTorch forward overwrites its MLP output with neighbor_vecs.
    """
    assert agg_type in ("add", "sum", "mean", "max")
    del alpha, num_sample, need_softmax  # dead inputs: never reach the output

    B, S, H, D = neighbor_vecs.shape
    HD = H * D
    # Lane-dense 2D trailing slab: (S, H*D) maps to (sublane, lane) with no
    # 4->8 / 32->128 padding waste (H*D = 128 in the example).
    x = neighbor_vecs.reshape(B, S, HD)
    itemsize = x.dtype.itemsize

    # Pick a batch tile that keeps the (double-buffered) input tile small;
    # prefer bt == B (single block) for small inputs, otherwise a multiple of
    # 8 that divides B so the output block satisfies the (8, 128) constraint.
    budget_bytes = 4 * 1024 * 1024
    per_batch_row = S * HD * itemsize
    bt = B
    if B * per_batch_row > budget_bytes and B % 8 == 0:
        bt = 8 * max(1, (budget_bytes // per_batch_row) // 8)
        bt = min(bt, B)
        while B % bt != 0:
            bt -= 8
        bt = max(bt, 8)
    grid = (B // bt,)

    kernel = _make_agg_kernel(agg_type)
    bytes_accessed = (B * S * HD + B * HD) * itemsize

    out2d = pl.pallas_call(
        kernel,
        out_shape=jax.ShapeDtypeStruct((B, HD), x.dtype),
        grid=grid,
        in_specs=[pl.BlockSpec((bt, S, HD), lambda i: (i, 0, 0))],
        out_specs=pl.BlockSpec((bt, HD), lambda i: (i, 0)),
        compiler_params=pltpu.CompilerParams(
            dimension_semantics=("parallel",),
        ),
        cost_estimate=pl.CostEstimate(
            flops=B * S * HD,
            transcendentals=0,
            bytes_accessed=bytes_accessed,
        ),
    )(x)

    return out2d.reshape(B, H, D)


if __name__ == "__main__":
    key = jax.random.PRNGKey(0)
    k1, k2 = jax.random.split(key)

    # [batch, num_sample, num_head, head_dim]
    B, S, H, D = 2, 8, 4, 32
    neighbor_vecs = jax.random.normal(k1, (B, S, H, D), jnp.float32)
    # alpha in the original API is [B * num_sample, num_head]; it is dead code
    # in this module's forward, but we pass it to exercise the wrapper API.
    alpha = jax.random.normal(k2, (B * S, H), jnp.float32)

    out = batch_pooling_aggregator(neighbor_vecs, alpha, S, agg_type="add")
    out = jax.block_until_ready(out)
    ref = jnp.sum(neighbor_vecs, axis=-3)
    assert out.shape == (B, H, D), out.shape
    assert jnp.allclose(out, ref, atol=1e-5, rtol=1e-5), "add/sum mismatch"

    out_mean = jax.block_until_ready(
        batch_pooling_aggregator(neighbor_vecs, alpha, S, agg_type="mean")
    )
    assert jnp.allclose(out_mean, jnp.mean(neighbor_vecs, axis=-3),
                        atol=1e-5, rtol=1e-5), "mean mismatch"

    out_max = jax.block_until_ready(
        batch_pooling_aggregator(neighbor_vecs, alpha, S, agg_type="max")
    )
    assert jnp.allclose(out_max, jnp.max(neighbor_vecs, axis=-3),
                        atol=1e-5, rtol=1e-5), "max mismatch"

    print("KERNEL_OK")
</pallas_src>

<mosaic_0001>
module attributes {stable_mosaic.version = 11 : i64} {
  func.func @kernel(%arg0: i32, %arg1: memref<2x8x128xf32, #tpu.memory_space<vmem>>, %arg2: memref<2x128xf32, #tpu.memory_space<vmem>>) attributes {dimension_semantics = [#tpu.dimension_semantics<parallel>], iteration_bounds = array<i64: 1>, scalar_prefetch = 0 : i64, scratch_operands = 0 : i64, tpu.core_type = #tpu.core_type<tc>, window_params = [{transform_indices = @transform_0, window_bounds = array<i64: 2, 8, 128>}, {transform_indices = @transform_1, window_bounds = array<i64: 2, 128>}]} {
    %c0 = arith.constant 0 : index
    %c0_0 = arith.constant 0 : index
    %c0_1 = arith.constant 0 : index
    %0 = vector.load %arg1[%c0, %c0_0, %c0_1] : memref<2x8x128xf32, #tpu.memory_space<vmem>>, vector<2x8x128xf32>
    %cst = arith.constant dense<0.000000e+00> : vector<2x128xf32>
    %1 = vector.multi_reduction <add>, %0, %cst [1] : vector<2x8x128xf32> to vector<2x128xf32>
    %c0_2 = arith.constant 0 : index
    %c0_3 = arith.constant 0 : index
    %2 = vector.load %arg2[%c0_2, %c0_3] : memref<2x128xf32, #tpu.memory_space<vmem>>, vector<2x128xf32>
    tpu.vector_store %arg2[%c0_2, %c0_3], %1 {strides = array<i32>} : memref<2x128xf32, #tpu.memory_space<vmem>>, vector<2x128xf32>,
    return
  }
  func.func @transform_0(%arg0: i32) -> (i32, i32, i32) {
    %c0_i32 = arith.constant 0 : i32
    %c0_i32_0 = arith.constant 0 : i32
    %c0_i32_1 = arith.constant 0 : i32
    return %arg0, %c0_i32, %c0_i32_0 : i32, i32, i32
  }
  func.func @transform_1(%arg0: i32) -> (i32, i32) {
    %c0_i32 = arith.constant 0 : i32
    %c0_i32_0 = arith.constant 0 : i32
    return %arg0, %c0_i32 : i32, i32
  }
}

</mosaic_0001>

<llo_original>
// kernel: tpu_custom_call.1
$region0: #{tpu_custom_call.1}
  #allocation0 [shape = 'u32[]', space=smem, size = 0x4, offset = 0x4, fixed_abs, tag = 'smem constant byte address 0x4 - core index']
  #allocation1 [shape = 'u32[72,128]{1,0:T(1,128)}', space=vmem, size = 0x9000, scoped, tag = 'internal scratch']
  %s0 = inlined_call_operand.hbm [shape: f32[2,8,128], index: 0, kind: input, shape index: {}]
  %s1 = inlined_call_operand.hbm [shape: f32[2,128], index: 1, kind: output, shape index: {}]
  %s2 = sld [smem:[#allocation0]]
  $region18: #{tpu_custom_call.1} parent=0
    _
  %s4 = ssub.s32 1, %s2
  %s5 = scalar_select 0, %s4, %s2
  $region1: #{tpu_custom_call.1} parent=0
    #allocation2 [shape = 'u8[8192]{0}', space=vmem, size = 0x2000, scoped, tag = 'input window, operand 0, single buffered']
    #allocation3 [shape = 's32[1]{0}', space=sflag, size = 0x4, scoped, tag = 'scoped memory for tpu_custom_call.1']
    #allocation4 [shape = 's32[1]{0}', space=sflag, size = 0x4, scoped, tag = 'scoped memory for tpu_custom_call.1']
    #allocation5 [shape = 'u8[1024]{0}', space=vmem, size = 0x400, scoped, tag = 'output window, operand 0, single buffered']
    %6 = vsyncpa [#allocation3], 0
    %7 = vsyncpa [#allocation4], 0
    // Predicated region
    $region2: #{tpu_custom_call.1} parent=1 // pred_check
      _
    $region3: #{tpu_custom_call.1} parent=1 // pred_check_branch
      %9 = sbr.rel (0) target = $region5
    $region4: #{tpu_custom_call.1} parent=1 // pred_region
      %11 = vsyncadd [#allocation3], 0
      %s12 = sshll.u32 %s0, 4
      %s13 = int_to_ptr.hbm [resolvable:$true] %s12
      %s14 = sshll.u32 [#allocation2], 4
      %s15 = int_to_ptr.vmem [resolvable:$true] %s14
      %20 = dma.hbm_to_vmem [thread:$0]  %s13, 256, %s15, [#allocation3], 128, 128, 8
    $region5: #{tpu_custom_call.1} parent=1 // pred_fallthru
      _
    // Predicated region
    $region6: #{tpu_custom_call.1} parent=1 // pred_check
      _
    $region7: #{tpu_custom_call.1} parent=1 // pred_check_branch
      %22 = sbr.rel (0) target = $region9
    $region8: #{tpu_custom_call.1} parent=1 // pred_region
      %24 = dma.done [#allocation3], 256
    $region9: #{tpu_custom_call.1} parent=1 // pred_fallthru
      _
    %v25 = vld [vmem:[#allocation2] sm:$0xff]
    %v26 = vld [vmem:[#allocation2 + $0x8] sm:$0xff]
    %v27 = vrot.slane %v25, 4
    %v28 = vadd.f32 %v25, %v27
    %v29 = vrot.slane %v28, 2
    %v30 = vadd.f32 %v28, %v29
    %v31 = vrot.slane %v30, 1
    %v32 = vadd.f32 %v30, %v31
    %v33 = vrot.slane %v26, 4
    %v34 = vadd.f32 %v26, %v33
    %v35 = vrot.slane %v34, 2
    %v36 = vadd.f32 %v34, %v35
    %v37 = vrot.slane %v36, 1
    %v38 = vadd.f32 %v36, %v37
    %vm41 = vcmask 1041409
    %v42 = vsel %vm41, %v38, %v32
    %44 = vst [vmem:[#allocation5] sm:$0x3] %v42
    // Predicated region
    $region10: #{tpu_custom_call.1} parent=1 // pred_check
      _
    $region11: #{tpu_custom_call.1} parent=1 // pred_check_branch
      %46 = sbr.rel (0) target = $region13
    $region12: #{tpu_custom_call.1} parent=1 // pred_region
      %48 = vsyncadd [#allocation4], 0
      %s50 = sshll.u32 [#allocation5], 4
      %s51 = int_to_ptr.vmem [resolvable:$true] %s50
      %s52 = sshll.u32 %s1, 4
      %s53 = int_to_ptr.hbm [resolvable:$true] %s52
      %55 = dma.vmem_to_hbm [thread:$0]  %s51, 32, %s53, [#allocation4]
    $region13: #{tpu_custom_call.1} parent=1 // pred_fallthru
      _
    // Predicated region
    $region14: #{tpu_custom_call.1} parent=1 // pred_check
      _
    $region15: #{tpu_custom_call.1} parent=1 // pred_check_branch
      %57 = sbr.rel (0) target = $region17
    $region16: #{tpu_custom_call.1} parent=1 // pred_region
      %59 = dma.done [#allocation4], 32
    $region17: #{tpu_custom_call.1} parent=1 // pred_fallthru
      _
    %60 = vsyncpa [#allocation3], 1
    %61 = vsyncpa [#allocation4], 1

</llo_original>
